<compile_context>
chip_gen: v7x
topology: tpu7x:2x2x1
jax: 0.10.0
libtpu: 0.0.40
codegen_flags: <defaults>
</compile_context>

<pallas_src>
import jax
import jax.numpy as jnp
from jax.experimental import pallas as pl
from jax.experimental.pallas import tpu as pltpu


_TARGET_BLOCK_BYTES = 2 << 20   # ~2 MiB x-block -> near HBM roofline
_LANE = 128
_LANE_ROUND = 512


def _round_up(x, m):
    return ((x + m - 1) // m) * m


def _round_down(x, m):
    return (x // m) * m


def _outconv_kernel(x_ref, w_ref, b_ref, o_ref):
    # x_ref: (BN, C_in, TL)  w_ref: (C_out, C_in)  b_ref: (C_out, 1)
    # o_ref: (BN, C_out, TL)
    bn = x_ref.shape[0]
    c_out, c_in = w_ref.shape
    if bn == 1:
        # Single batch row per block: plain MXU matmul (C_out,C_in)@(C_in,TL).
        acc = jnp.dot(w_ref[...], x_ref[0], preferred_element_type=jnp.float32)
        o_ref[0] = (acc + b_ref[...]).astype(o_ref.dtype)
    else:
        # Batched MXU matmul over the grouped batch rows (W is tiny, so the
        # broadcast is cheap compared to the x-block DMA this grouping saves).
        w = jnp.broadcast_to(w_ref[...], (bn, c_out, c_in))
        acc = jax.lax.dot_general(
            w, x_ref[...],
            dimension_numbers=(((2,), (1,)), ((0,), (0,))),
            preferred_element_type=jnp.float32,
        )  # (BN, C_out, TL) in f32
        o_ref[...] = (acc + b_ref[...]).astype(o_ref.dtype)


def _choose_tiling(N, C_in, L, itemsize, target_bytes=_TARGET_BLOCK_BYTES):
    """Pick (BN, TL) so the x-block is ~target_bytes, lane-dense and legal."""
    row_bytes = C_in * itemsize
    max_tl = max(_LANE, target_bytes // row_bytes)
    if L <= max_tl:
        tl = L                                   # full L -> always a legal block dim
    else:
        if max_tl >= _LANE_ROUND:
            tl = _round_down(max_tl, _LANE_ROUND)
        else:
            tl = _round_down(max_tl, _LANE)
        tl = max(tl, _LANE)                      # guaranteed multiple of 128

    # Pack several batch rows per block when the per-batch data is small.
    blk_bytes = C_in * tl * itemsize
    bn = int(max(1, min(N, target_bytes // blk_bytes)))

    # Guarantee >= 2 grid steps whenever possible (v7x has 2 TensorCores and
    # "parallel" semantics only help if there is more than one grid point;
    # the extra step costs ~0.35 us on v5e/v6e -> negligible).
    if pl.cdiv(N, bn) * pl.cdiv(L, tl) < 2:
        if bn > 1 and N > 1:
            bn = -(-N // 2)                      # two batch blocks
        elif tl == L and L >= 2 * _LANE:
            tl = _round_up(-(-L // 2), _LANE)    # two 128-aligned L tiles
    return bn, tl


def out_conv(x, weight, bias):
    """1x1 Conv1d.  x: (N, C_in, L)  weight: (C_out, C_in[, 1])  bias: (C_out,)
    -> (N, C_out, L).  Native NCL layout throughout (no transposes)."""
    N, C_in, L = x.shape
    if weight.ndim == 3:                 # accept PyTorch Conv1d weight (C_out, C_in, 1)
        weight = weight[:, :, 0]
    C_out = weight.shape[0]

    weight = weight.astype(x.dtype)                       # MXU operand dtype match
    b2 = bias.reshape(C_out, 1).astype(jnp.float32)       # added to f32 accumulator

    itemsize = jnp.dtype(x.dtype).itemsize
    bn, tl = _choose_tiling(N, C_in, L, itemsize)
    grid = (pl.cdiv(N, bn), pl.cdiv(L, tl))

    # Explicit VMEM budget (conservatively assume everything double-buffered).
    x_blk = bn * C_in * tl * itemsize
    o_blk = bn * C_out * tl * itemsize
    w_bytes = (C_out * C_in) * jnp.dtype(weight.dtype).itemsize + C_out * 4
    footprint = 2 * (x_blk + o_blk) + 2 * w_bytes
    vmem_limit = int(max(32 << 20, min(2 * footprint, 64 << 20)))
    # TODO(synk): for very large C_in (x-block > ~12 MiB even at TL=128) add a
    # third "arbitrary" grid axis over C_in with an f32 VMEM accumulator (P3);
    # not needed for typical OutConv channel counts.

    cost = pl.CostEstimate(
        flops=2 * N * L * C_in * C_out,
        transcendentals=0,
        bytes_accessed=(x.size + N * C_out * L) * itemsize
        + weight.size * jnp.dtype(weight.dtype).itemsize
        + bias.size * jnp.dtype(bias.dtype).itemsize,
    )

    return pl.pallas_call(
        _outconv_kernel,
        out_shape=jax.ShapeDtypeStruct((N, C_out, L), x.dtype),
        grid=grid,
        in_specs=[
            # x block: BN batch rows, full channels, lane-dense L tile.
            pl.BlockSpec((bn, C_in, tl), lambda n, l: (n, 0, l)),
            # weight / bias: constant index_map -> resident across the grid.
            pl.BlockSpec((C_out, C_in), lambda n, l: (0, 0)),
            pl.BlockSpec((C_out, 1), lambda n, l: (0, 0)),
        ],
        out_specs=pl.BlockSpec((bn, C_out, tl), lambda n, l: (n, 0, l)),
        compiler_params=pltpu.CompilerParams(
            dimension_semantics=("parallel", "parallel"),
            vmem_limit_bytes=vmem_limit,
        ),
        cost_estimate=cost,
    )(x, weight, b2)


if __name__ == "__main__":
    # Small shapes consistent with Conv1d(in_ch, out_ch, 1): x is (N, C_in, L)
    N, C_IN, C_OUT, L = 4, 4, 3, 16

    key = jax.random.PRNGKey(0)
    kx, kw, kb = jax.random.split(key, 3)

    x = jax.random.normal(kx, (N, C_IN, L), dtype=jnp.float32)
    # PyTorch Conv1d weight shape (C_out, C_in, 1)
    weight = jax.random.normal(kw, (C_OUT, C_IN, 1), dtype=jnp.float32) * 0.1
    bias = jax.random.normal(kb, (C_OUT,), dtype=jnp.float32) * 0.1

    # Primary run (exercises the batch-grouped path: BN > 1).
    out = jax.block_until_ready(out_conv(x, weight, bias))
    ref = jnp.einsum("oi,nil->nol", weight[:, :, 0], x) + bias[None, :, None]
    assert out.shape == (N, C_OUT, L), out.shape
    assert jnp.allclose(out, ref, atol=1e-5, rtol=1e-5), "mismatch vs reference"

    # Secondary run: single batch row, longer L (exercises BN==1 + L tiling).
    x2 = jax.random.normal(kx, (1, C_IN, 2048), dtype=jnp.float32)
    out2 = jax.block_until_ready(out_conv(x2, weight, bias))
    ref2 = jnp.einsum("oi,nil->nol", weight[:, :, 0], x2) + bias[None, :, None]
    assert jnp.allclose(out2, ref2, atol=1e-5, rtol=1e-5), "mismatch vs reference (tiled L)"

    print("KERNEL_OK")
</pallas_src>

<mosaic_0001>
module attributes {stable_mosaic.version = 11 : i64} {
  func.func @_outconv_kernel(%arg0: i32, %arg1: i32, %arg2: memref<2x4x16xf32, #tpu.memory_space<vmem>>, %arg3: memref<3x4xf32, #tpu.memory_space<vmem>>, %arg4: memref<3x1xf32, #tpu.memory_space<vmem>>, %arg5: memref<2x3x16xf32, #tpu.memory_space<vmem>>) attributes {dimension_semantics = [#tpu.dimension_semantics<parallel>, #tpu.dimension_semantics<parallel>], iteration_bounds = array<i64: 2, 1>, scalar_prefetch = 0 : i64, scratch_operands = 0 : i64, tpu.core_type = #tpu.core_type<tc>, window_params = [{transform_indices = @transform_0, window_bounds = array<i64: 2, 4, 16>}, {pipeline_mode = #tpu.pipeline_mode<synchronous>, transform_indices = @transform_1, window_bounds = array<i64: 3, 4>}, {pipeline_mode = #tpu.pipeline_mode<synchronous>, transform_indices = @transform_2, window_bounds = array<i64: 3, 1>}, {transform_indices = @transform_3, window_bounds = array<i64: 2, 3, 16>}]} {
    %c0 = arith.constant 0 : index
    %c0_0 = arith.constant 0 : index
    %0 = vector.load %arg3[%c0, %c0_0] : memref<3x4xf32, #tpu.memory_space<vmem>>, vector<3x4xf32>
    %1 = vector.shape_cast %0 : vector<3x4xf32> to vector<1x3x4xf32>
    %2 = vector.broadcast %1 : vector<1x3x4xf32> to vector<2x3x4xf32>
    %c0_1 = arith.constant 0 : index
    %c0_2 = arith.constant 0 : index
    %c0_3 = arith.constant 0 : index
    %3 = vector.load %arg2[%c0_1, %c0_2, %c0_3] : memref<2x4x16xf32, #tpu.memory_space<vmem>>, vector<2x4x16xf32>
    %cst = arith.constant dense<0.000000e+00> : vector<2x3x16xf32>
    %4 = tpu.matmul %2, %3, %cst {dimension_numbers = #tpu.dot_dimension_numbers<[2], [1], [1], [2], [0, 0, 0, 1, 1, 2], [0], [0]>} : vector<2x3x4xf32>, vector<2x4x16xf32>, vector<2x3x16xf32> -> vector<2x3x16xf32>
    %c0_4 = arith.constant 0 : index
    %c0_5 = arith.constant 0 : index
    %5 = vector.load %arg4[%c0_4, %c0_5] : memref<3x1xf32, #tpu.memory_space<vmem>>, vector<3x1xf32>
    %6 = vector.shape_cast %5 : vector<3x1xf32> to vector<1x3x1xf32>
    %7 = vector.broadcast %6 : vector<1x3x1xf32> to vector<2x3x16xf32>
    %8 = arith.addf %4, %7 : vector<2x3x16xf32>
    %c0_6 = arith.constant 0 : index
    %c0_7 = arith.constant 0 : index
    %c0_8 = arith.constant 0 : index
    %9 = vector.load %arg5[%c0_6, %c0_7, %c0_8] : memref<2x3x16xf32, #tpu.memory_space<vmem>>, vector<2x3x16xf32>
    tpu.vector_store %arg5[%c0_6, %c0_7, %c0_8], %8 {strides = array<i32>} : memref<2x3x16xf32, #tpu.memory_space<vmem>>, vector<2x3x16xf32>,
    return
  }
  func.func @transform_0(%arg0: i32, %arg1: i32) -> (i32, i32, i32) {
    %c0_i32 = arith.constant 0 : i32
    %c0_i32_0 = arith.constant 0 : i32
    return %arg0, %c0_i32, %arg1 : i32, i32, i32
  }
  func.func @transform_1(%arg0: i32, %arg1: i32) -> (i32, i32) {
    %c0_i32 = arith.constant 0 : i32
    %c0_i32_0 = arith.constant 0 : i32
    %c0_i32_1 = arith.constant 0 : i32
    return %c0_i32, %c0_i32_0 : i32, i32
  }
  func.func @transform_2(%arg0: i32, %arg1: i32) -> (i32, i32) {
    %c0_i32 = arith.constant 0 : i32
    %c0_i32_0 = arith.constant 0 : i32
    %c0_i32_1 = arith.constant 0 : i32
    return %c0_i32, %c0_i32_0 : i32, i32
  }
  func.func @transform_3(%arg0: i32, %arg1: i32) -> (i32, i32, i32) {
    %c0_i32 = arith.constant 0 : i32
    %c0_i32_0 = arith.constant 0 : i32
    return %arg0, %c0_i32, %arg1 : i32, i32, i32
  }
}

</mosaic_0001>

<llo_original>
// kernel: tpu_custom_call.1
$region0: #{tpu_custom_call.1}
  #allocation0 [shape = 'u32[]', space=smem, size = 0x4, offset = 0x4, fixed_abs, tag = 'smem constant byte address 0x4 - core index']
  #allocation1 [shape = 'u32[144,128]{1,0:T(1,128)}', space=vmem, size = 0x12000, scoped, tag = 'internal scratch']
  %s0 = inlined_call_operand.hbm [shape: f32[4,4,16], index: 0, kind: input, shape index: {}]
  %s1 = inlined_call_operand.vmem [shape: f32[3,4], index: 1, kind: input, shape index: {}]
  %s2 = inlined_call_operand.vmem [shape: f32[3,1], index: 2, kind: input, shape index: {}]
  %s3 = inlined_call_operand.vmem [shape: f32[4,3,16], index: 3, kind: output, shape index: {}]
  %s4 = sld [smem:[#allocation0]]
  $region49: #{tpu_custom_call.1} parent=0
    _
  %s6 = ssub.s32 1, %s4
  %s7 = scalar_select 0, %s6, %s4
  $region1: #{tpu_custom_call.1} parent=0
    #allocation2 [shape = 'u8[8192]{0}', space=vmem, size = 0x2000, scoped, tag = 'input window, operand 0']
    #allocation3 [shape = 's32[2]{0}', space=sflag, size = 0x8, scoped, tag = 'scoped memory for tpu_custom_call.1']
    %8 = vsyncpa [#allocation3], 0
    %s9 = scalar_lea.sflag [#allocation3], 1
    %10 = vsyncpa %s9, 0
    loop: start=0, step=1, limit=4
    $region2: #{tpu_custom_call.1} parent=1 // loop_pre_header
      _
    $region3: #{tpu_custom_call.1} parent=1 // loop_header
      %s12 = sphi 0, %s16
      %p13 = scmp.ge.s32.totalorder %s12, 4
      %s19 = sphi 0, %s31
      %s20 = sphi 0, %s27
      %s21 = sphi 0, %s19
      %s22 = sphi 0, %s20
      %s23 = sphi 0, %s21
      %s24 = sphi 0, %s22
      %s36 = sphi 0, %s38
      %s39 = sphi 0, %s36
      %s40 = sphi 0, %s39
      %s56 = sphi 0, %s40
      %s60 = sphi 0, %s60
      %s62 = sphi 0, %s60
      %s63 = sphi 0, %s62
      %s77 = sphi 0, %s63
      %s81 = sphi 0, %s81
      %s83 = sphi 0, %s81
      %s84 = sphi 0, %s83
      %s98 = sphi 0, %s84
      %s106 = sphi 0, %s108
      %s109 = sphi 0, %s106
      %s110 = sphi 0, %s109
      %s126 = sphi 0, %s110
    $region4: #{tpu_custom_call.1} parent=1 // loop_header_branch
      %15 = sbr.rel (%p13) target = $region8
    $region5: #{tpu_custom_call.1} parent=1 // loop_body
      %s17 = ssub.s32 %s12, 1
      %s18 = ssub.s32 %s12, 2
      %s25 = sadd.s32 1, %s20
      %p26 = scmp.ge.s32.totalorder %s25, 1
      %s27 = scalar_select %p26, 0, %s25
      %s28 = sadd.s32 1, %s19
      %s29 = scalar_select %p26, %s28, %s19
      %p30 = scmp.ge.s32.totalorder %s29, 2
      %s31 = scalar_select %p30, 0, %s29
      %s32 = ssub.s32 %s19, %s31
      %s33 = ssub.s32 %s20, %s27
      %s34 = sor.u32 %s32, %s33
      %p35 = scmp.eq.s32.totalorder %s34, 0
      %s37 = sadd.s32 %s36, 1
      %s38 = scalar_select %p35, %s36, %s37
      %p41 = pneg %p35
      %p42 = scmp.eq.s32.totalorder %s12, 1
      %p43 = por %p41, %p42
      %p44 = scmp.ne.s32.totalorder %s36, %s39
      %p45 = scmp.eq.s32.totalorder %s12, 0
      %p46 = por %p44, %p45
      %p47 = scmp.ne.s32.totalorder %s36, %s39
      %p48 = scmp.eq.s32.totalorder %s17, 1
      %p49 = por %p47, %p48
      %p50 = scmp.ne.s32.totalorder %s39, %s40
      %p51 = scmp.eq.s32.totalorder %s17, 0
      %p52 = por %p50, %p51
      %p53 = scmp.ne.s32.totalorder %s39, %s40
      %p54 = scmp.eq.s32.totalorder %s18, 1
      %p55 = por %p53, %p54
      %p57 = scmp.ne.s32.totalorder %s40, %s56
      %p58 = scmp.eq.s32.totalorder %s18, 0
      %p59 = por %p57, %p58
      %s61 = sadd.s32 %s60, 1
      %p64 = scmp.eq.s32.totalorder %s12, 1
      %p65 = scmp.ne.s32.totalorder %s60, %s62
      %p66 = scmp.eq.s32.totalorder %s12, 0
      %p67 = por %p65, %p66
      %p68 = scmp.ne.s32.totalorder %s60, %s62
      %p69 = scmp.eq.s32.totalorder %s17, 1
      %p70 = por %p68, %p69
      %p71 = scmp.ne.s32.totalorder %s62, %s63
      %p72 = scmp.eq.s32.totalorder %s17, 0
      %p73 = por %p71, %p72
      %p74 = scmp.ne.s32.totalorder %s62, %s63
      %p75 = scmp.eq.s32.totalorder %s18, 1
      %p76 = por %p74, %p75
      %p78 = scmp.ne.s32.totalorder %s63, %s77
      %p79 = scmp.eq.s32.totalorder %s18, 0
      %p80 = por %p78, %p79
      %s82 = sadd.s32 %s81, 1
      %p85 = scmp.eq.s32.totalorder %s12, 1
      %p86 = scmp.ne.s32.totalorder %s81, %s83
      %p87 = scmp.eq.s32.totalorder %s12, 0
      %p88 = por %p86, %p87
      %p89 = scmp.ne.s32.totalorder %s81, %s83
      %p90 = scmp.eq.s32.totalorder %s17, 1
      %p91 = por %p89, %p90
      %p92 = scmp.ne.s32.totalorder %s83, %s84
      %p93 = scmp.eq.s32.totalorder %s17, 0
      %p94 = por %p92, %p93
      %p95 = scmp.ne.s32.totalorder %s83, %s84
      %p96 = scmp.eq.s32.totalorder %s18, 1
      %p97 = por %p95, %p96
      %p99 = scmp.ne.s32.totalorder %s84, %s98
      %p100 = scmp.eq.s32.totalorder %s18, 0
      %p101 = por %p99, %p100
      %s102 = ssub.s32 %s19, %s31
      %s103 = ssub.s32 %s20, %s27
      %s104 = sor.u32 %s102, %s103
      %p105 = scmp.eq.s32.totalorder %s104, 0
      %s107 = sadd.s32 %s106, 1
      %s108 = scalar_select %p105, %s106, %s107
      %p111 = pneg %p105
      %p112 = scmp.eq.s32.totalorder %s12, 1
      %p113 = por %p111, %p112
      %p114 = scmp.ne.s32.totalorder %s106, %s109
      %p115 = scmp.eq.s32.totalorder %s12, 0
      %p116 = por %p114, %p115
      %p117 = scmp.ne.s32.totalorder %s106, %s109
      %p118 = scmp.eq.s32.totalorder %s17, 1
      %p119 = por %p117, %p118
      %p120 = scmp.ne.s32.totalorder %s109, %s110
      %p121 = scmp.eq.s32.totalorder %s17, 0
      %p122 = por %p120, %p121
      %p123 = scmp.ne.s32.totalorder %s109, %s110
      %p124 = scmp.eq.s32.totalorder %s18, 1
      %p125 = por %p123, %p124
      %p127 = scmp.ne.s32.totalorder %s110, %s126
      %p128 = scmp.eq.s32.totalorder %s18, 0
      %p129 = por %p127, %p128
      %p130 = scmp.le.s32.totalorder 1, %s12
      %p131 = scmp.lt.s32.totalorder %s12, 3
      %p132 = pnand %p130, %p131
      %p133 = pneg %p132
      // Predicated region
      $region9: #{tpu_custom_call.1} parent=5 // pred_check
        _
      $region10: #{tpu_custom_call.1} parent=5 // pred_check_branch
        %135 = sbr.rel (%p132) target = $region12
      $region11: #{tpu_custom_call.1} parent=5 // pred_region
        %s136 = ssub.s32 %s12, 1
        // Predicated region
        $region13: #{tpu_custom_call.1} parent=11 // pred_check
          %p137 = pneg %p73
        $region14: #{tpu_custom_call.1} parent=11 // pred_check_branch
          %139 = sbr.rel (%p137) target = $region16
        $region15: #{tpu_custom_call.1} parent=11 // pred_region
          _
        $region16: #{tpu_custom_call.1} parent=11 // pred_fallthru
          _
        // Predicated region
        $region17: #{tpu_custom_call.1} parent=11 // pred_check
          %p140 = pneg %p94
        $region18: #{tpu_custom_call.1} parent=11 // pred_check_branch
          %142 = sbr.rel (%p140) target = $region20
        $region19: #{tpu_custom_call.1} parent=11 // pred_region
          _
        $region20: #{tpu_custom_call.1} parent=11 // pred_fallthru
          _
      $region12: #{tpu_custom_call.1} parent=5 // pred_fallthru
        _
      %p143 = scmp.lt.s32.totalorder %s12, 2
      // Predicated region
      $region21: #{tpu_custom_call.1} parent=5 // pred_check
        %p144 = pneg %p143
      $region22: #{tpu_custom_call.1} parent=5 // pred_check_branch
        %146 = sbr.rel (%p144) target = $region24
      $region23: #{tpu_custom_call.1} parent=5 // pred_region
        // Predicated region
        $region25: #{tpu_custom_call.1} parent=23 // pred_check
          %p147 = pneg %p46
        $region26: #{tpu_custom_call.1} parent=23 // pred_check_branch
          %149 = sbr.rel (%p147) target = $region28
        $region27: #{tpu_custom_call.1} parent=23 // pred_region
          %s150 = sand.u32 %s36, 1
          %s151 = scalar_lea.sflag [#allocation3], %s150
          %s152 = sand.u32 %s36, 1
          %s153 = smul.addr %s152, 8
          %s154 = scalar_lea.vmem [#allocation2], %s153
          %s155 = smul.u32 2, %s19
          %s157 = ssub.s32 128, 128
          %158 = vsyncadd %s151, %s157
          %s159 = sadd.s32 %s20, %s155
          %s160 = smul.addr %s159, 64
          %s161 = scalar_lea.hbm %s0, %s160
          %s162 = sshll.u32 %s154, 4
          %s163 = int_to_ptr.vmem [resolvable:$true] %s162
          %168 = dma.hbm_to_vmem [thread:$0]  %s161, 128, %s163, %s151, 64, 64, 4
        $region28: #{tpu_custom_call.1} parent=23 // pred_fallthru
          _
      $region24: #{tpu_custom_call.1} parent=5 // pred_fallthru
        _
      %p169 = scmp.le.s32.totalorder 1, %s12
      %p170 = scmp.lt.s32.totalorder %s12, 3
      %p171 = pnand %p169, %p170
      %p172 = pneg %p171
      // Predicated region
      $region29: #{tpu_custom_call.1} parent=5 // pred_check
        _
      $region30: #{tpu_custom_call.1} parent=5 // pred_check_branch
        %174 = sbr.rel (%p171) target = $region32
      $region31: #{tpu_custom_call.1} parent=5 // pred_region
        %s175 = ssub.s32 %s12, 1
        %s176 = sand.u32 %s39, 1
        %s177 = scalar_lea.sflag [#allocation3], %s176
        %s178 = sand.u32 %s39, 1
        %s179 = smul.addr %s178, 8
        %s180 = scalar_lea.vmem [#allocation2], %s179
        // Predicated region
        $region33: #{tpu_custom_call.1} parent=31 // pred_check
          %p181 = pneg %p52
        $region34: #{tpu_custom_call.1} parent=31 // pred_check_branch
          %183 = sbr.rel (%p181) target = $region36
        $region35: #{tpu_custom_call.1} parent=31 // pred_region
          %184 = dma.done %s177, 128
        $region36: #{tpu_custom_call.1} parent=31 // pred_fallthru
          _
        %s185 = sand.u32 %s39, 1
        %s186 = scalar_lea.sflag [#allocation3], %s185
        %s187 = sand.u32 %s39, 1
        %s188 = smul.addr %s187, 8
        %s189 = scalar_lea.vmem [#allocation2], %s188
        %p190 = pneg %p52
        %p191 = pneg %p49
        %p192 = pneg %p73
        %p193 = pneg %p70
        %p194 = pneg %p94
        %p195 = pneg %p91
        %p196 = pneg %p122
        %p197 = pneg %p119
        %s198 = smul.u32 2, %s21
        %p199 = scmp.lt.s32.totalorder %s198, 3
        %s200 = scalar_select %p199, %s198, 3
        %p201 = scmp.lt.s32.totalorder %s22, 0
        %s202 = scalar_select %p201, %s22, 0
        %s203 = sadd.s32 %s202, %s200
        %s204 = smul.addr %s203, 4
        %s205 = scalar_lea.vmem %s3, %s204
        %s206 = smul.u32 2, %s21
        %s207 = smul.u32 2, %s21
        %p208 = scmp.lt.s32.totalorder %s207, 3
        %s209 = scalar_select %p208, %s207, 3
        %p210 = scmp.lt.s32.totalorder %s22, 0
        %s211 = scalar_select %p210, %s22, 0
        %s212 = sadd.s32 %s211, %s209
        %s213 = smul.addr %s212, 4
        %s214 = scalar_lea.vmem %s3, %s213
        %s215 = smul.u32 2, %s21
        %v216 = vld [vmem:[%s1] sm:$0x7]
        %v217 = vld [vmem:[%s180] sm:$0xf]
        %v218 = vld [vmem:[%s180 + $0x4] sm:$0xf]
        %v219 = vld [vmem:[%s2] sm:$0x7]
        %221 = vset.pattern.permute.xlu0 0
        %222 = vperm.xlu0 %221, %v219
        %v223 = vpop.permute.xlu0 %222
        %vm225 = vcmask 31744
        %v227 = vsel %vm225, %v216, 0
        %vm229 = vcmask 1043456
        %v231 = vsel %vm229, %v217, 0
        %233 = vmatprep.subr.mxu0 0.0
        %234 = vmatpush1.msra.mxu0 %v231
        %235 = vmatprep.subr.mxu0 0.0
        %236 = vmatpush1.msra.mxu0 0.0
        %237 = vmatprep.subr.mxu0 0.0
        %238 = vmatpush1.msra.mxu0 0.0
        %239 = vmatprep.subr.mxu0 0.0
        %240 = vmatpush1.msra.mxu0 0.0
        %241 = vmatprep.subr.mxu0 0.0
        %242 = vmatpush1.msra.mxu0 0.0
        %243 = vmatprep.subr.mxu0 0.0
        %244 = vmatpush1.msra.mxu0 0.0
        %245 = vmatprep.subr.mxu0 0.0
        %246 = vmatpush1.msra.mxu0 0.0
        %247 = vmatprep.subr.mxu0 0.0
        %248 = vmatpush1.msra.mxu0 0.0
        %249 = vmatprep.subr.mxu0 0.0
        %250 = vmatpush1.msra.mxu0 0.0
        %251 = vmatprep.subr.mxu0 0.0
        %252 = vmatpush1.msra.mxu0 0.0
        %253 = vmatprep.subr.mxu0 0.0
        %254 = vmatpush1.msra.mxu0 0.0
        %255 = vmatprep.subr.mxu0 0.0
        %256 = vmatpush1.msra.mxu0 0.0
        %257 = vmatprep.subr.mxu0 0.0
        %258 = vmatpush1.msra.mxu0 0.0
        %259 = vmatprep.subr.mxu0 0.0
        %260 = vmatpush1.msra.mxu0 0.0
        %261 = vmatprep.subr.mxu0 0.0
        %262 = vmatpush1.msra.mxu0 0.0
        %263 = vmatprep.subr.mxu0 0.0
        %264 = vmatpush1.msra.mxu0 0.0
        %265 = vmatprep.subr.mxu0 0.0
        %266 = vmatpush1.msra.mxu0 0.0
        %267 = vmatprep.subr.mxu0 0.0
        %268 = vmatpush1.msra.mxu0 0.0
        %269 = vmatprep.subr.mxu0 0.0
        %270 = vmatpush1.msra.mxu0 0.0
        %271 = vmatprep.subr.mxu0 0.0
        %272 = vmatpush1.msra.mxu0 0.0
        %273 = vmatprep.subr.mxu0 0.0
        %274 = vmatpush1.msra.mxu0 0.0
        %275 = vmatprep.subr.mxu0 0.0
        %276 = vmatpush1.msra.mxu0 0.0
        %277 = vmatprep.subr.mxu0 0.0
        %278 = vmatpush1.msra.mxu0 0.0
        %279 = vmatprep.subr.mxu0 0.0
        %280 = vmatpush1.msra.mxu0 0.0
        %281 = vmatprep.subr.mxu0 0.0
        %282 = vmatpush1.msra.mxu0 0.0
        %283 = vmatprep.subr.mxu0 0.0
        %284 = vmatpush1.msra.mxu0 0.0
        %285 = vmatprep.subr.mxu0 0.0
        %286 = vmatpush1.msra.mxu0 0.0
        %287 = vmatprep.subr.mxu0 0.0
        %288 = vmatpush1.msra.mxu0 0.0
        %289 = vmatprep.subr.mxu0 0.0
        %290 = vmatpush1.msra.mxu0 0.0
        %291 = vmatprep.subr.mxu0 0.0
        %292 = vmatpush1.msra.mxu0 0.0
        %293 = vmatprep.subr.mxu0 0.0
        %294 = vmatpush1.msra.mxu0 0.0
        %295 = vmatprep.subr.mxu0 0.0
        %296 = vmatpush1.msra.mxu0 0.0
        %297 = vmatprep.mubr.f32.mxu0 0.0
        %298 = vmatmul.mubr.f32.gmra.mrb[0].mxu0 %v227
        %v299 = vpop.f32.mrb[0].mxu0
        %v300 = vadd.f32 %v223, %v299
        %v301 = vpop.f32.mrb[0].mxu0
        %302 = vdwg.mxu0
        %v304 = vsel %vm229, %v218, 0
        %306 = vmatprep.subr.mxu0 0.0
        %307 = vmatpush1.msra.mxu0 %v304
        %308 = vmatprep.subr.mxu0 0.0
        %309 = vmatpush1.msra.mxu0 0.0
        %310 = vmatprep.subr.mxu0 0.0
        %311 = vmatpush1.msra.mxu0 0.0
        %312 = vmatprep.subr.mxu0 0.0
        %313 = vmatpush1.msra.mxu0 0.0
        %314 = vmatprep.subr.mxu0 0.0
        %315 = vmatpush1.msra.mxu0 0.0
        %316 = vmatprep.subr.mxu0 0.0
        %317 = vmatpush1.msra.mxu0 0.0
        %318 = vmatprep.subr.mxu0 0.0
        %319 = vmatpush1.msra.mxu0 0.0
        %320 = vmatprep.subr.mxu0 0.0
        %321 = vmatpush1.msra.mxu0 0.0
        %322 = vmatprep.subr.mxu0 0.0
        %323 = vmatpush1.msra.mxu0 0.0
        %324 = vmatprep.subr.mxu0 0.0
        %325 = vmatpush1.msra.mxu0 0.0
        %326 = vmatprep.subr.mxu0 0.0
        %327 = vmatpush1.msra.mxu0 0.0
        %328 = vmatprep.subr.mxu0 0.0
        %329 = vmatpush1.msra.mxu0 0.0
        %330 = vmatprep.subr.mxu0 0.0
        %331 = vmatpush1.msra.mxu0 0.0
        %332 = vmatprep.subr.mxu0 0.0
        %333 = vmatpush1.msra.mxu0 0.0
        %334 = vmatprep.subr.mxu0 0.0
        %335 = vmatpush1.msra.mxu0 0.0
        %336 = vmatprep.subr.mxu0 0.0
        %337 = vmatpush1.msra.mxu0 0.0
        %338 = vmatprep.subr.mxu0 0.0
        %339 = vmatpush1.msra.mxu0 0.0
        %340 = vmatprep.subr.mxu0 0.0
        %341 = vmatpush1.msra.mxu0 0.0
        %342 = vmatprep.subr.mxu0 0.0
        %343 = vmatpush1.msra.mxu0 0.0
        %344 = vmatprep.subr.mxu0 0.0
        %345 = vmatpush1.msra.mxu0 0.0
        %346 = vmatprep.subr.mxu0 0.0
        %347 = vmatpush1.msra.mxu0 0.0
        %348 = vmatprep.subr.mxu0 0.0
        %349 = vmatpush1.msra.mxu0 0.0
        %350 = vmatprep.subr.mxu0 0.0
        %351 = vmatpush1.msra.mxu0 0.0
        %352 = vmatprep.subr.mxu0 0.0
        %353 = vmatpush1.msra.mxu0 0.0
        %354 = vmatprep.subr.mxu0 0.0
        %355 = vmatpush1.msra.mxu0 0.0
        %356 = vmatprep.subr.mxu0 0.0
        %357 = vmatpush1.msra.mxu0 0.0
        %358 = vmatprep.subr.mxu0 0.0
        %359 = vmatpush1.msra.mxu0 0.0
        %360 = vmatprep.subr.mxu0 0.0
        %361 = vmatpush1.msra.mxu0 0.0
        %362 = vmatprep.subr.mxu0 0.0
        %363 = vmatpush1.msra.mxu0 0.0
        %364 = vmatprep.subr.mxu0 0.0
        %365 = vmatpush1.msra.mxu0 0.0
        %366 = vmatprep.subr.mxu0 0.0
        %367 = vmatpush1.msra.mxu0 0.0
        %368 = vmatprep.subr.mxu0 0.0
        %369 = vmatpush1.msra.mxu0 0.0
        %370 = vmatprep.mubr.f32.mxu0 0.0
        %371 = vmatmul.mubr.f32.gmra.mrb[0].mxu0 %v227
        %v372 = vpop.f32.mrb[0].mxu0
        %v373 = vadd.f32 %v223, %v372
        %v374 = vpop.f32.mrb[0].mxu0
        %375 = vdwg.mxu0
        %vm376 = vcmask 124928
        %377 = vst.msk [vmem:[%s214] sm:$0x7] %vm376, %v300
        %378 = vst.msk [vmem:[%s214 + $0x4] sm:$0x7] %vm376, %v373
        %s379 = smul.u32 2, %s21
        %p380 = scmp.lt.s32.totalorder %s379, 3
        %s381 = scalar_select %p380, %s379, 3
        %p382 = scmp.lt.s32.totalorder %s22, 0
        %s383 = scalar_select %p382, %s22, 0
        %s384 = sadd.s32 %s383, %s381
        %s385 = smul.addr %s384, 4
        %s386 = scalar_lea.vmem %s3, %s385
        // Predicated region
        $region37: #{tpu_custom_call.1} parent=31 // pred_check
          %p387 = pneg %p119
        $region38: #{tpu_custom_call.1} parent=31 // pred_check_branch
          %389 = sbr.rel (%p387) target = $region40
        $region39: #{tpu_custom_call.1} parent=31 // pred_region
          %s390 = smul.u32 2, %s21
        $region40: #{tpu_custom_call.1} parent=31 // pred_fallthru
          _
      $region32: #{tpu_custom_call.1} parent=5 // pred_fallthru
        _
      %p391 = scmp.le.s32.totalorder 2, %s12
      // Predicated region
      $region41: #{tpu_custom_call.1} parent=5 // pred_check
        %p392 = pneg %p391
      $region42: #{tpu_custom_call.1} parent=5 // pred_check_branch
        %394 = sbr.rel (%p392) target = $region44
      $region43: #{tpu_custom_call.1} parent=5 // pred_region
        %s395 = ssub.s32 %s12, 2
        // Predicated region
        $region45: #{tpu_custom_call.1} parent=43 // pred_check
          %p396 = pneg %p125
        $region46: #{tpu_custom_call.1} parent=43 // pred_check_branch
          %398 = sbr.rel (%p396) target = $region48
        $region47: #{tpu_custom_call.1} parent=43 // pred_region
          %s399 = smul.u32 2, %s23
          %p400 = scmp.lt.s32.totalorder %s399, 3
          %s401 = scalar_select %p400, %s399, 3
          %p402 = scmp.lt.s32.totalorder %s24, 0
          %s403 = scalar_select %p402, %s24, 0
          %s404 = sadd.s32 %s403, %s401
          %s405 = smul.addr %s404, 4
          %s406 = scalar_lea.vmem %s3, %s405
        $region48: #{tpu_custom_call.1} parent=43 // pred_fallthru
          _
      $region44: #{tpu_custom_call.1} parent=5 // pred_fallthru
        _
    $region6: #{tpu_custom_call.1} parent=1 // loop_footer
      %s16 = sadd.s32 1, %s12
    $region7: #{tpu_custom_call.1} parent=1 // loop_footer_branch
      %11 = sbr.rel target = $region3
    $region8: #{tpu_custom_call.1} parent=1 // loop_exit
      _
    %407 = vsyncpa [#allocation3], 1
    %s408 = scalar_lea.sflag [#allocation3], 1
    %409 = vsyncpa %s408, 1

</llo_original>
